<compile_context>
chip_gen: v6e
topology: v6e:2x2x1
jax: 0.10.0
libtpu: 0.0.40
codegen_flags: <defaults>
</compile_context>

<pallas_src>
import functools

import jax
import jax.numpy as jnp
from jax.experimental import pallas as pl
from jax.experimental.pallas import tpu as pltpu


def _round_up(a, b):
    return -(-a // b) * b


@functools.lru_cache(maxsize=None)
def _tpu_mem_budgets():
    """Generation-aware (vmem_limit_bytes, per-step tile budget)."""
    phys = None
    try:
        info = pltpu.get_tpu_info()
        phys = getattr(info, "vmem_capacity_bytes", None)
    except Exception:
        phys = None
    if not phys:
        phys = 64 * 1024 * 1024            # conservative (v7x-sized) fallback
    vmem_limit = min(int(phys * 0.75), 112 * 1024 * 1024)   # ~48 MiB v7x, ~96 MiB v5e/v6e
    tile_budget = min(int(phys * 0.17), 24 * 1024 * 1024)   # ~11 MiB v7x, ~22 MiB v5e/v6e
    return vmem_limit, tile_budget


# ---------------------------------------------------------------------------
# Kernel bodies
# ---------------------------------------------------------------------------
def _conv_stats_kernel(x_ref, w_ref, b_ref, y_ref, sum_ref, sq_ref):
    """y = x @ w + b (bf16 in, f32 MXU acc); bias-centered per-channel stats.

    Stats are accumulated on the pre-bias product z, so zero-padded tail rows
    and zero-padded K columns contribute exactly 0 (no masking needed).
    sum_ref / sq_ref block indices are constant along the inner grid axis, so
    they stay VMEM-resident and act as the accumulators directly.
    """
    i = pl.program_id(1)
    z = jnp.dot(x_ref[...], w_ref[...], preferred_element_type=jnp.float32)
    y_ref[...] = (z + b_ref[...]).astype(y_ref.dtype)      # bf16 intermediate

    @pl.when(i == 0)
    def _():
        sum_ref[...] = jnp.zeros_like(sum_ref)
        sq_ref[...] = jnp.zeros_like(sq_ref)

    sum_ref[...] += jnp.sum(z, axis=0, keepdims=True)
    sq_ref[...] += jnp.sum(z * z, axis=0, keepdims=True)


def _dw_conv_stats_kernel(xph_ref, w_ref, b_ref, y_ref, sum_ref, sq_ref,
                          *, kh, kw, stride, Ho, Wo):
    """Depthwise conv as a VPU direct conv (channels on lanes), one image/step.

    xph_ref: (phases, Hq, Wq, Cp).  For stride==1 phases==1 and every tap is a
    plain shifted window; for stride>1 the padded image was phase-split so all
    tap slices are contiguous (unit-stride) windows.
    Per-image partial stats are written to this step's own output block, so
    the image axis can be marked "parallel".
    """
    # TODO(synk): tile over output rows (haloed blocks) so large feature maps
    # do not need a whole-image block + f32 accumulator in VMEM (v7x: 64 MiB).
    cp = b_ref.shape[-1]
    acc = jnp.zeros((Ho, Wo, cp), jnp.float32)
    for t in range(kh * kw):                  # static tap loop (unrolled)
        dh, dw = t // kw, t % kw
        if stride == 1:
            phase, r0, c0 = 0, dh, dw
        else:
            phase = (dh % stride) * stride + (dw % stride)
            r0, c0 = dh // stride, dw // stride
        patch = xph_ref[phase, r0:r0 + Ho, c0:c0 + Wo, :].astype(jnp.float32)
        acc = acc + patch * w_ref[t:t + 1, :].astype(jnp.float32)
    y_ref[...] = (acc + b_ref[...]).astype(y_ref.dtype)     # bf16 intermediate

    sum_ref[...] = jnp.sum(jnp.sum(acc, axis=0), axis=0, keepdims=True)
    sq_ref[...] = jnp.sum(jnp.sum(acc * acc, axis=0), axis=0, keepdims=True)


def _bn_silu_kernel(y_ref, scale_ref, shift_ref, o_ref):
    """yhat = y * scale + shift ; out = yhat * sigmoid(yhat)  (SiLU on EUP)."""
    yhat = y_ref[...].astype(jnp.float32) * scale_ref[...] + shift_ref[...]
    o_ref[...] = (yhat * jax.nn.sigmoid(yhat)).astype(o_ref.dtype)


# ---------------------------------------------------------------------------
# Host-side glue
# ---------------------------------------------------------------------------
def _affine_from_stats(ssum, ssq, bias_p, gamma_p, beta_p, count, eps):
    """Combine bias-centered partial stats and fold BN into scale/shift."""
    cp = ssum.shape[-1]
    tot = ssum.reshape(-1, cp).sum(axis=0)
    tot2 = ssq.reshape(-1, cp).sum(axis=0)
    mean_z = tot / count
    var = jnp.maximum(tot2 / count - mean_z * mean_z, 0.0)   # shift-invariant
    mean = mean_z + bias_p
    inv = jax.lax.rsqrt(var + eps)
    scale = gamma_p * inv
    shift = beta_p - mean * scale
    return (scale.reshape(1, cp).astype(jnp.float32),
            shift.reshape(1, cp).astype(jnp.float32))


def _im2col_bf16(x_nhwc, kh, kw, stride, padding, ho, wo):
    # TODO(synk): k>1 dense convs (the stem 3x3) still build a kh*kw-times
    # blown-up bf16 im2col in HBM; an in-kernel tap loop over haloed blocks
    # would remove this extra HBM traffic.
    n, _, _, cin = x_nhwc.shape
    xp = jnp.pad(x_nhwc, ((0, 0), (padding, padding), (padding, padding), (0, 0)))
    cols = []
    for dh in range(kh):
        for dw in range(kw):
            cols.append(xp[:, dh:dh + stride * ho:stride,
                           dw:dw + stride * wo:stride, :])
    pat = jnp.stack(cols, axis=-1)                      # (N, Ho, Wo, Cin, kh*kw)
    return pat.reshape(n * ho * wo, cin * kh * kw).astype(jnp.bfloat16)


def _bn_silu_rows(y2d, scale2, shift2, tm, total_tiles, cp, out_dtype,
                  vmem_limit, tile_budget):
    """Large-tile BN+SiLU over a (total_tiles*tm, cp) bf16 slab."""
    # Mem-bound pass: pick the biggest row tile that (a) divides the slab and
    # (b) fits the budget (bf16 in + f32 out, both double-buffered).
    rows_budget = max(tm, tile_budget // (12 * cp))
    rows_target = max(tm, min(2048, rows_budget))
    f = 1
    for d in range(total_tiles, 0, -1):
        if total_tiles % d == 0 and d * tm <= rows_target:
            f = d
            break
    tbn = f * tm
    mp = total_tiles * tm
    return pl.pallas_call(
        _bn_silu_kernel,
        grid=(total_tiles // f,),
        in_specs=[
            pl.BlockSpec((tbn, cp), lambda i: (i, 0)),
            pl.BlockSpec((1, cp), lambda i: (0, 0)),
            pl.BlockSpec((1, cp), lambda i: (0, 0)),
        ],
        out_specs=pl.BlockSpec((tbn, cp), lambda i: (i, 0)),
        out_shape=jax.ShapeDtypeStruct((mp, cp), out_dtype),
        compiler_params=pltpu.CompilerParams(
            dimension_semantics=("parallel",),
            vmem_limit_bytes=vmem_limit),
    )(y2d, scale2, shift2)


def _conv_bn_silu_dense(x, weight, bias, gamma, beta, stride, padding, eps,
                        out_format):
    """groups == 1 path: bf16 MXU matmul with fused batch-stat accumulation."""
    n, cin, h, w = x.shape
    cout, _, kh, kw = weight.shape
    ho = (h + 2 * padding - kh) // stride + 1
    wo = (w + 2 * padding - kw) // stride + 1
    m = n * ho * wo
    k = cin * kh * kw
    cp = _round_up(cout, 128)                 # lane-dense output channels
    vmem_limit, tile_budget = _tpu_mem_budgets()

    x_nhwc = jnp.transpose(x, (0, 2, 3, 1))
    if kh == 1 and kw == 1 and padding == 0:
        # pointwise conv (most of EfficientNet): no im2col at all
        xcol = x_nhwc[:, ::stride, ::stride, :].reshape(m, cin).astype(jnp.bfloat16)
    else:
        xcol = _im2col_bf16(x_nhwc, kh, kw, stride, padding, ho, wo)

    # Lane-dense K only when the zero-pad overhead is small; padding K=8->128
    # would multiply HBM read traffic on these mem-bound layers.
    kp = _round_up(k, 128)
    if kp != k and kp * 8 > k * 9:            # > 12.5% extra traffic -> skip
        kp = k
    if kp != k:
        xcol = jnp.pad(xcol, ((0, 0), (0, kp - k)))

    # M tiling: 512-row tiles (bf16-aware budget: x/y bf16 double-buffered,
    # weights resident once), cdiv grid, 2-way "parallel" leading axis so both
    # v7x TensorCores get work (per-core partial stats combined in JAX below).
    tm = 512
    while tm > 16 and (4 * tm * (kp + cp) + 2 * kp * cp + 4 * cp) > tile_budget:
        tm //= 2
    if m <= tm:
        tm = max(16, _round_up(m, 16))        # bf16 sublane packing unit is 16
        split, n_inner = 1, 1
    else:
        n_tiles = pl.cdiv(m, tm)
        split = 2 if n_tiles >= 2 else 1
        n_inner = pl.cdiv(n_tiles, split)
    mp = split * n_inner * tm
    if mp > m:
        xcol = jnp.pad(xcol, ((0, mp - m), (0, 0)))   # zero rows: stats-neutral

    w2 = jnp.transpose(weight.reshape(cout, k), (1, 0))
    w2 = jnp.pad(w2, ((0, kp - k), (0, cp - cout))).astype(jnp.bfloat16)  # (Kp, Cp)
    b2 = jnp.pad(bias, (0, cp - cout)).reshape(1, cp).astype(jnp.float32)

    y, ssum, ssq = pl.pallas_call(
        _conv_stats_kernel,
        grid=(split, n_inner),
        in_specs=[
            pl.BlockSpec((tm, kp), lambda c, i: (c * n_inner + i, 0)),
            pl.BlockSpec((kp, cp), lambda c, i: (0, 0)),
            pl.BlockSpec((1, cp), lambda c, i: (0, 0)),
        ],
        out_specs=[
            pl.BlockSpec((tm, cp), lambda c, i: (c * n_inner + i, 0)),
            pl.BlockSpec((None, 1, cp), lambda c, i: (c, 0, 0)),
            pl.BlockSpec((None, 1, cp), lambda c, i: (c, 0, 0)),
        ],
        out_shape=[
            jax.ShapeDtypeStruct((mp, cp), jnp.bfloat16),       # bf16 intermediate
            jax.ShapeDtypeStruct((split, 1, cp), jnp.float32),  # per-core sum(z)
            jax.ShapeDtypeStruct((split, 1, cp), jnp.float32),  # per-core sum(z^2)
        ],
        compiler_params=pltpu.CompilerParams(
            dimension_semantics=("parallel", "arbitrary"),
            vmem_limit_bytes=vmem_limit),
    )(xcol, w2, b2)

    bias_p = jnp.pad(bias, (0, cp - cout)).astype(jnp.float32)
    gamma_p = jnp.pad(gamma, (0, cp - cout)).astype(jnp.float32)
    beta_p = jnp.pad(beta, (0, cp - cout)).astype(jnp.float32)
    scale2, shift2 = _affine_from_stats(ssum, ssq, bias_p, gamma_p, beta_p,
                                        float(m), eps)

    out_dtype = jnp.bfloat16 if out_format == "nhwc_bf16" else jnp.float32
    out_p = _bn_silu_rows(y, scale2, shift2, tm, split * n_inner, cp, out_dtype,
                          vmem_limit, tile_budget)

    if out_format == "nhwc_bf16":
        # Cp-padded, channels-last, bf16: chained blocks consume this directly
        # (skips the slice + NCHW transpose + f32 cast passes).
        return out_p[:m].reshape(n, ho, wo, cp)
    out = out_p[:m, :cout].reshape(n, ho, wo, cout)
    return jnp.transpose(out, (0, 3, 1, 2))


def _dw_conv_bn_silu(x, weight, bias, gamma, beta, stride, padding, eps,
                     out_format):
    """Depthwise path: VPU direct conv, channels padded to 128 lanes, no MXU."""
    n, c, h, w = x.shape
    _, _, kh, kw = weight.shape
    s = stride
    ho = (h + 2 * padding - kh) // s + 1
    wo = (w + 2 * padding - kw) // s + 1
    cp = _round_up(c, 128)
    taps = kh * kw
    vmem_limit, tile_budget = _tpu_mem_budgets()

    # channels-last, zero-pad spatially and channel-pad to Cp.
    x_nhwc = jnp.transpose(x, (0, 2, 3, 1))
    xp = jnp.pad(x_nhwc, ((0, 0), (padding, padding), (padding, padding),
                          (0, cp - c)))
    hp, wp = h + 2 * padding, w + 2 * padding
    if s == 1:
        # no phase split for stride 1: avoid an extra full HBM copy pass.
        hq, wq = hp, wp
        xph = xp[:, None].astype(jnp.bfloat16)          # (N, 1, Hp, Wp, Cp)
        n_phase = 1
    else:
        # split into s^2 phase sub-grids so every in-kernel tap slice is a
        # contiguous (unit-stride) window.
        hq, wq = -(-hp // s), -(-wp // s)
        phases = []
        for ph_ in range(s):
            for pw_ in range(s):
                sub = xp[:, ph_::s, pw_::s, :]
                sub = jnp.pad(sub, ((0, 0), (0, hq - sub.shape[1]),
                                    (0, wq - sub.shape[2]), (0, 0)))
                phases.append(sub)
        xph = jnp.stack(phases, axis=1).astype(jnp.bfloat16)  # (N, s*s, Hq, Wq, Cp)
        n_phase = s * s

    wd = jnp.pad(jnp.transpose(weight.reshape(c, taps), (1, 0)),
                 ((0, 0), (0, cp - c))).astype(jnp.bfloat16)        # (taps, Cp)
    b2 = jnp.pad(bias, (0, cp - c)).reshape(1, cp).astype(jnp.float32)

    kern = functools.partial(_dw_conv_stats_kernel, kh=kh, kw=kw, stride=s,
                             Ho=ho, Wo=wo)
    y4, ssum, ssq = pl.pallas_call(
        kern,
        grid=(n,),
        in_specs=[
            pl.BlockSpec((None, n_phase, hq, wq, cp), lambda i: (i, 0, 0, 0, 0)),
            pl.BlockSpec((taps, cp), lambda i: (0, 0)),
            pl.BlockSpec((1, cp), lambda i: (0, 0)),
        ],
        out_specs=[
            pl.BlockSpec((None, ho, wo, cp), lambda i: (i, 0, 0, 0)),
            pl.BlockSpec((None, 1, cp), lambda i: (i, 0, 0)),
            pl.BlockSpec((None, 1, cp), lambda i: (i, 0, 0)),
        ],
        out_shape=[
            jax.ShapeDtypeStruct((n, ho, wo, cp), jnp.bfloat16),
            jax.ShapeDtypeStruct((n, 1, cp), jnp.float32),   # per-image sum(z)
            jax.ShapeDtypeStruct((n, 1, cp), jnp.float32),   # per-image sum(z^2)
        ],
        compiler_params=pltpu.CompilerParams(
            dimension_semantics=("parallel",),   # per-image partials -> parallel OK
            vmem_limit_bytes=vmem_limit),
    )(xph, wd, b2)

    bias_p = jnp.pad(bias, (0, cp - c)).astype(jnp.float32)
    gamma_p = jnp.pad(gamma, (0, cp - c)).astype(jnp.float32)
    beta_p = jnp.pad(beta, (0, cp - c)).astype(jnp.float32)
    scale2, shift2 = _affine_from_stats(ssum, ssq, bias_p, gamma_p, beta_p,
                                        float(n * ho * wo), eps)

    out_dtype = jnp.bfloat16 if out_format == "nhwc_bf16" else jnp.float32
    out4 = pl.pallas_call(
        _bn_silu_kernel,
        grid=(n,),
        in_specs=[
            pl.BlockSpec((None, ho, wo, cp), lambda i: (i, 0, 0, 0)),
            pl.BlockSpec((1, cp), lambda i: (0, 0)),
            pl.BlockSpec((1, cp), lambda i: (0, 0)),
        ],
        out_specs=pl.BlockSpec((None, ho, wo, cp), lambda i: (i, 0, 0, 0)),
        out_shape=jax.ShapeDtypeStruct((n, ho, wo, cp), out_dtype),
        compiler_params=pltpu.CompilerParams(
            dimension_semantics=("parallel",),
            vmem_limit_bytes=vmem_limit),
    )(y4, scale2, shift2)

    if out_format == "nhwc_bf16":
        return out4                                   # Cp-padded NHWC bf16
    return jnp.transpose(out4[:, :, :, :c], (0, 3, 1, 2))


def cnn_block_forward(x, weight, bias, gamma, beta, *, stride, padding,
                      groups=1, eps=1e-5, out_format="nchw_f32"):
    """x: (N, Cin, H, W) f32; weight: (Cout, Cin/groups, kh, kw).

    out_format="nchw_f32" (default) matches the PyTorch module exactly;
    out_format="nhwc_bf16" returns a Cp-padded NHWC bf16 tensor for chaining
    blocks without extra transpose/cast passes.
    """
    _, cin, _, _ = x.shape
    cout, cin_g, _, _ = weight.shape
    assert cin_g * groups == cin and cout % groups == 0
    if groups == 1:
        return _conv_bn_silu_dense(x, weight, bias, gamma, beta,
                                   stride, padding, eps, out_format)
    if groups == cin and cin_g == 1 and cout == cin:
        return _dw_conv_bn_silu(x, weight, bias, gamma, beta,
                                stride, padding, eps, out_format)
    # TODO(synk): general grouped conv (1 < groups < Cin, or a channel
    # multiplier) is not used by EfficientNet and is not implemented.
    raise NotImplementedError("unsupported group configuration")


# ---------------------------------------------------------------------------
# Reference + test harness
# ---------------------------------------------------------------------------
def _reference(x, weight, bias, gamma, beta, *, stride, padding, groups, eps=1e-5):
    y = jax.lax.conv_general_dilated(
        x, weight, window_strides=(stride, stride),
        padding=[(padding, padding), (padding, padding)],
        dimension_numbers=("NCHW", "OIHW", "NCHW"),
        feature_group_count=groups)
    y = y + bias[None, :, None, None]
    mean = y.mean(axis=(0, 2, 3), keepdims=True)
    var = ((y - mean) ** 2).mean(axis=(0, 2, 3), keepdims=True)
    yhat = ((y - mean) / jnp.sqrt(var + eps)) * gamma[None, :, None, None] \
        + beta[None, :, None, None]
    return yhat * jax.nn.sigmoid(yhat)


def _make_params(key, in_ch, out_ch, k, groups):
    k1, k2, k3, k4 = jax.random.split(key, 4)
    weight = 0.1 * jax.random.normal(k1, (out_ch, in_ch // groups, k, k),
                                     dtype=jnp.float32)
    bias = 0.1 * jax.random.normal(k2, (out_ch,), dtype=jnp.float32)
    gamma = 1.0 + 0.1 * jax.random.normal(k3, (out_ch,), dtype=jnp.float32)
    beta = 0.1 * jax.random.normal(k4, (out_ch,), dtype=jnp.float32)
    return weight, bias, gamma, beta


def _check(out, ref, tag):
    assert out.shape == ref.shape, (tag, out.shape, ref.shape)
    # bf16 MXU inputs + bf16 conv intermediate => ~1e-2 scale error after BN.
    assert jnp.allclose(out, ref, atol=3e-2, rtol=3e-2), \
        (tag, float(jnp.max(jnp.abs(out - ref))))


if __name__ == "__main__":
    key = jax.random.PRNGKey(0)
    kx, kp1, kp2, kx3, kp3 = jax.random.split(key, 5)

    # Config 1: standard 3x3 conv (groups=1), stride 1, padding 1.
    N, Cin, H, W = 2, 4, 16, 16
    x = jax.random.normal(kx, (N, Cin, H, W), dtype=jnp.float32)
    w1, b1, g1, be1 = _make_params(kp1, Cin, 8, 3, 1)
    out1 = cnn_block_forward(x, w1, b1, g1, be1, stride=1, padding=1, groups=1)
    jax.block_until_ready(out1)
    ref1 = _reference(x, w1, b1, g1, be1, stride=1, padding=1, groups=1)
    _check(out1, ref1, "dense3x3")

    # Config 2: depthwise 3x3 conv (groups=Cin), stride 2, padding 1.
    w2, b2, g2, be2 = _make_params(kp2, Cin, Cin, 3, Cin)
    out2 = cnn_block_forward(x, w2, b2, g2, be2, stride=2, padding=1, groups=Cin)
    jax.block_until_ready(out2)
    ref2 = _reference(x, w2, b2, g2, be2, stride=2, padding=1, groups=Cin)
    _check(out2, ref2, "depthwise3x3")

    # Config 2b: depthwise 3x3 conv, stride 1 (exercises the no-phase-split path).
    out2b = cnn_block_forward(x, w2, b2, g2, be2, stride=1, padding=1, groups=Cin)
    jax.block_until_ready(out2b)
    ref2b = _reference(x, w2, b2, g2, be2, stride=1, padding=1, groups=Cin)
    _check(out2b, ref2b, "depthwise3x3_s1")

    # Config 3: pointwise 1x1 conv, stride 1, padding 0, with M not a multiple
    # of the default tile (exercises the small-M fallback path).
    Cin3, Cout3, H3 = 8, 16, 12
    x3 = jax.random.normal(kx3, (N, Cin3, H3, H3), dtype=jnp.float32)
    w3, b3, g3, be3 = _make_params(kp3, Cin3, Cout3, 1, 1)
    out3 = cnn_block_forward(x3, w3, b3, g3, be3, stride=1, padding=0, groups=1)
    jax.block_until_ready(out3)
    ref3 = _reference(x3, w3, b3, g3, be3, stride=1, padding=0, groups=1)
    _check(out3, ref3, "pointwise1x1")

    print("KERNEL_OK")
</pallas_src>

<mosaic_0001>
module attributes {stable_mosaic.version = 11 : i64} {
  func.func @_conv_stats_kernel(%arg0: i32, %arg1: i32, %arg2: memref<512x36xbf16, #tpu.memory_space<vmem>>, %arg3: memref<36x128xbf16, #tpu.memory_space<vmem>>, %arg4: memref<1x128xf32, #tpu.memory_space<vmem>>, %arg5: memref<512x128xbf16, #tpu.memory_space<vmem>>, %arg6: memref<1x1x128xf32, #tpu.memory_space<vmem>>, %arg7: memref<1x1x128xf32, #tpu.memory_space<vmem>>) attributes {dimension_semantics = [#tpu.dimension_semantics<parallel>, #tpu.dimension_semantics<arbitrary>], iteration_bounds = array<i64: 1, 1>, scalar_prefetch = 0 : i64, scratch_operands = 0 : i64, tpu.core_type = #tpu.core_type<tc>, window_params = [{transform_indices = @transform_0, window_bounds = array<i64: 512, 36>}, {pipeline_mode = #tpu.pipeline_mode<synchronous>, transform_indices = @transform_1, window_bounds = array<i64: 36, 128>}, {pipeline_mode = #tpu.pipeline_mode<synchronous>, transform_indices = @transform_2, window_bounds = array<i64: 1, 128>}, {transform_indices = @transform_3, window_bounds = array<i64: 512, 128>}, {transform_indices = @transform_4, window_bounds = array<i64: 1, 1, 128>}, {transform_indices = @transform_5, window_bounds = array<i64: 1, 1, 128>}]} {
    %c0 = arith.constant 0 : index
    %c0_0 = arith.constant 0 : index
    %0 = vector.load %arg2[%c0, %c0_0] : memref<512x36xbf16, #tpu.memory_space<vmem>>, vector<512x36xbf16>
    %c0_1 = arith.constant 0 : index
    %c0_2 = arith.constant 0 : index
    %1 = vector.load %arg3[%c0_1, %c0_2] : memref<36x128xbf16, #tpu.memory_space<vmem>>, vector<36x128xbf16>
    %cst = arith.constant dense<0.000000e+00> : vector<512x128xf32>
    %2 = tpu.matmul %0, %1, %cst {dimension_numbers = #tpu.dot_dimension_numbers<[1], [0], [0], [1], [0, 0, 1, 1], [], []>} : vector<512x36xbf16>, vector<36x128xbf16>, vector<512x128xf32> -> vector<512x128xf32>
    %c0_3 = arith.constant 0 : index
    %c0_4 = arith.constant 0 : index
    %3 = vector.load %arg4[%c0_3, %c0_4] : memref<1x128xf32, #tpu.memory_space<vmem>>, vector<1x128xf32>
    %4 = vector.broadcast %3 : vector<1x128xf32> to vector<512x128xf32>
    %5 = arith.addf %2, %4 : vector<512x128xf32>
    %6 = arith.truncf %5 : vector<512x128xf32> to vector<512x128xbf16>
    %c0_5 = arith.constant 0 : index
    %c0_6 = arith.constant 0 : index
    %7 = vector.load %arg5[%c0_5, %c0_6] : memref<512x128xbf16, #tpu.memory_space<vmem>>, vector<512x128xbf16>
    tpu.vector_store %arg5[%c0_5, %c0_6], %6 {strides = array<i32>} : memref<512x128xbf16, #tpu.memory_space<vmem>>, vector<512x128xbf16>,
    %c0_i32 = arith.constant 0 : i32
    %8 = arith.cmpi eq, %arg1, %c0_i32 : i32
    %9 = arith.extui %8 : i1 to i32
    %c0_i32_7 = arith.constant 0 : i32
    %10 = arith.cmpi ne, %9, %c0_i32_7 : i32
    scf.if %10 {
      %cst_22 = arith.constant 0.000000e+00 : f32
      %28 = vector.broadcast %cst_22 : f32 to vector<1x128xf32>
      %c0_23 = arith.constant 0 : index
      %c0_24 = arith.constant 0 : index
      %c0_25 = arith.constant 0 : index
      %29 = vector.load %arg6[%c0_23, %c0_24, %c0_25] : memref<1x1x128xf32, #tpu.memory_space<vmem>>, vector<1x1x128xf32>
      %30 = vector.shape_cast %29 : vector<1x1x128xf32> to vector<1x128xf32>
      %31 = vector.shape_cast %28 : vector<1x128xf32> to vector<1x1x128xf32>
      tpu.vector_store %arg6[%c0_23, %c0_24, %c0_25], %31 {strides = array<i32>} : memref<1x1x128xf32, #tpu.memory_space<vmem>>, vector<1x1x128xf32>,
      %cst_26 = arith.constant 0.000000e+00 : f32
      %32 = vector.broadcast %cst_26 : f32 to vector<1x128xf32>
      %c0_27 = arith.constant 0 : index
      %c0_28 = arith.constant 0 : index
      %c0_29 = arith.constant 0 : index
      %33 = vector.load %arg7[%c0_27, %c0_28, %c0_29] : memref<1x1x128xf32, #tpu.memory_space<vmem>>, vector<1x1x128xf32>
      %34 = vector.shape_cast %33 : vector<1x1x128xf32> to vector<1x128xf32>
      %35 = vector.shape_cast %32 : vector<1x128xf32> to vector<1x1x128xf32>
      tpu.vector_store %arg7[%c0_27, %c0_28, %c0_29], %35 {strides = array<i32>} : memref<1x1x128xf32, #tpu.memory_space<vmem>>, vector<1x1x128xf32>,
    } else {
    }
    %c0_8 = arith.constant 0 : index
    %c0_9 = arith.constant 0 : index
    %c0_10 = arith.constant 0 : index
    %11 = vector.load %arg6[%c0_8, %c0_9, %c0_10] : memref<1x1x128xf32, #tpu.memory_space<vmem>>, vector<1x1x128xf32>
    %12 = vector.shape_cast %11 : vector<1x1x128xf32> to vector<1x128xf32>
    %cst_11 = arith.constant dense<0.000000e+00> : vector<128xf32>
    %13 = vector.multi_reduction <add>, %2, %cst_11 [0] : vector<512x128xf32> to vector<128xf32>
    %14 = vector.shape_cast %13 : vector<128xf32> to vector<1x128xf32>
    %15 = arith.addf %12, %14 : vector<1x128xf32>
    %c0_12 = arith.constant 0 : index
    %c0_13 = arith.constant 0 : index
    %c0_14 = arith.constant 0 : index
    %16 = vector.load %arg6[%c0_12, %c0_13, %c0_14] : memref<1x1x128xf32, #tpu.memory_space<vmem>>, vector<1x1x128xf32>
    %17 = vector.shape_cast %16 : vector<1x1x128xf32> to vector<1x128xf32>
    %18 = vector.shape_cast %15 : vector<1x128xf32> to vector<1x1x128xf32>
    tpu.vector_store %arg6[%c0_12, %c0_13, %c0_14], %18 {strides = array<i32>} : memref<1x1x128xf32, #tpu.memory_space<vmem>>, vector<1x1x128xf32>,
    %c0_15 = arith.constant 0 : index
    %c0_16 = arith.constant 0 : index
    %c0_17 = arith.constant 0 : index
    %19 = vector.load %arg7[%c0_15, %c0_16, %c0_17] : memref<1x1x128xf32, #tpu.memory_space<vmem>>, vector<1x1x128xf32>
    %20 = vector.shape_cast %19 : vector<1x1x128xf32> to vector<1x128xf32>
    %21 = arith.mulf %2, %2 : vector<512x128xf32>
    %cst_18 = arith.constant dense<0.000000e+00> : vector<128xf32>
    %22 = vector.multi_reduction <add>, %21, %cst_18 [0] : vector<512x128xf32> to vector<128xf32>
    %23 = vector.shape_cast %22 : vector<128xf32> to vector<1x128xf32>
    %24 = arith.addf %20, %23 : vector<1x128xf32>
    %c0_19 = arith.constant 0 : index
    %c0_20 = arith.constant 0 : index
    %c0_21 = arith.constant 0 : index
    %25 = vector.load %arg7[%c0_19, %c0_20, %c0_21] : memref<1x1x128xf32, #tpu.memory_space<vmem>>, vector<1x1x128xf32>
    %26 = vector.shape_cast %25 : vector<1x1x128xf32> to vector<1x128xf32>
    %27 = vector.shape_cast %24 : vector<1x128xf32> to vector<1x1x128xf32>
    tpu.vector_store %arg7[%c0_19, %c0_20, %c0_21], %27 {strides = array<i32>} : memref<1x1x128xf32, #tpu.memory_space<vmem>>, vector<1x1x128xf32>,
    return
  }
  func.func @transform_0(%arg0: i32, %arg1: i32) -> (i32, i32) {
    %c1_i32 = arith.constant 1 : i32
    %0 = arith.muli %arg0, %c1_i32 : i32
    %1 = arith.addi %0, %arg1 : i32
    %c0_i32 = arith.constant 0 : i32
    %c0_i32_0 = arith.constant 0 : i32
    return %1, %c0_i32 : i32, i32
  }
  func.func @transform_1(%arg0: i32, %arg1: i32) -> (i32, i32) {
    %c0_i32 = arith.constant 0 : i32
    %c0_i32_0 = arith.constant 0 : i32
    %c0_i32_1 = arith.constant 0 : i32
    return %c0_i32, %c0_i32_0 : i32, i32
  }
  func.func @transform_2(%arg0: i32, %arg1: i32) -> (i32, i32) {
    %c0_i32 = arith.constant 0 : i32
    %c0_i32_0 = arith.constant 0 : i32
    %c0_i32_1 = arith.constant 0 : i32
    return %c0_i32, %c0_i32_0 : i32, i32
  }
  func.func @transform_3(%arg0: i32, %arg1: i32) -> (i32, i32) {
    %c1_i32 = arith.constant 1 : i32
    %0 = arith.muli %arg0, %c1_i32 : i32
    %1 = arith.addi %0, %arg1 : i32
    %c0_i32 = arith.constant 0 : i32
    %c0_i32_0 = arith.constant 0 : i32
    return %1, %c0_i32 : i32, i32
  }
  func.func @transform_4(%arg0: i32, %arg1: i32) -> (i32, i32, i32) {
    %c0_i32 = arith.constant 0 : i32
    %c0_i32_0 = arith.constant 0 : i32
    %c0_i32_1 = arith.constant 0 : i32
    return %arg0, %c0_i32, %c0_i32_0 : i32, i32, i32
  }
  func.func @transform_5(%arg0: i32, %arg1: i32) -> (i32, i32, i32) {
    %c0_i32 = arith.constant 0 : i32
    %c0_i32_0 = arith.constant 0 : i32
    %c0_i32_1 = arith.constant 0 : i32
    return %arg0, %c0_i32, %c0_i32_0 : i32, i32, i32
  }
}

</mosaic_0001>

<llo_original>
// kernel: tpu_custom_call.1
$region0: #{tpu_custom_call.1}
  #allocation0 [shape = 'u32[]', space=smem, size = 0x4, offset = 0x4, fixed_abs, tag = 'smem constant byte address 0x4 - core index']
  #allocation1 [shape = 'u32[144,128]{1,0:T(1,128)}', space=vmem, size = 0x12000, scoped, tag = 'internal scratch']
  %s0 = inlined_call_operand.vmem [shape: bf16[512,36], index: 0, kind: input, shape index: {}]
  %s1 = inlined_call_operand.vmem [shape: bf16[36,128], index: 1, kind: input, shape index: {}]
  %s2 = inlined_call_operand.vmem [shape: f32[1,128], index: 2, kind: input, shape index: {}]
  %s3 = inlined_call_operand.hbm [shape: bf16[512,128], index: 3, kind: output, shape index: {0}]
  %s4 = inlined_call_operand.hbm [shape: f32[1,1,128], index: 4, kind: output, shape index: {1}]
  %s5 = inlined_call_operand.hbm [shape: f32[1,1,128], index: 5, kind: output, shape index: {2}]
  %6 = xla_tuple %s3, %s4, %s5
  %s7 = sld [smem:[#allocation0]]
  $region42: #{tpu_custom_call.1} parent=0
    _
  %s9 = ssub.s32 1, %s7
  %s10 = scalar_select 0, %s9, %s7
  $region1: #{tpu_custom_call.1} parent=0
    #allocation2 [shape = 'u8[131072]{0}', space=vmem, size = 0x20000, scoped, tag = 'output window, operand 0, single buffered']
    #allocation3 [shape = 's32[1]{0}', space=sflag, size = 0x4, scoped, tag = 'scoped memory for tpu_custom_call.1']
    #allocation4 [shape = 'u8[512]{0}', space=vmem, size = 0x400, scoped, tag = 'output window, operand 1, single buffered']
    #allocation5 [shape = 's32[1]{0}', space=sflag, size = 0x4, scoped, tag = 'scoped memory for tpu_custom_call.1']
    #allocation6 [shape = 'u8[512]{0}', space=vmem, size = 0x400, scoped, tag = 'output window, operand 2, single buffered']
    %11 = vsyncpa [#allocation3], 0
    %12 = vsyncpa [#allocation5], 0
    // Predicated region
    $region2: #{tpu_custom_call.1} parent=1 // pred_check
      _
    $region3: #{tpu_custom_call.1} parent=1 // pred_check_branch
      %14 = sbr.rel (0) target = $region5
    $region4: #{tpu_custom_call.1} parent=1 // pred_region
      %s15 = sadd.s32 0, 0
      %s16 = smul.u32 64, %s15
      %p17 = scmp.lt.s32.totalorder %s16, 63
      %s18 = scalar_select %p17, %s16, 63
      %s19 = smul.addr %s18, 4
      %s20 = scalar_lea.vmem %s0, %s19
      %s21 = sadd.s32 0, 0
      %s22 = smul.u32 64, %s21
    $region5: #{tpu_custom_call.1} parent=1 // pred_fallthru
      _
    // Predicated region
    $region6: #{tpu_custom_call.1} parent=1 // pred_check
      _
    $region7: #{tpu_custom_call.1} parent=1 // pred_check_branch
      %24 = sbr.rel (0) target = $region9
    $region8: #{tpu_custom_call.1} parent=1 // pred_region
      _
    $region9: #{tpu_custom_call.1} parent=1 // pred_fallthru
      _
    // Predicated region
    $region10: #{tpu_custom_call.1} parent=1 // pred_check
      _
    $region11: #{tpu_custom_call.1} parent=1 // pred_check_branch
      %26 = sbr.rel (0) target = $region13
    $region12: #{tpu_custom_call.1} parent=1 // pred_region
      _
    $region13: #{tpu_custom_call.1} parent=1 // pred_fallthru
      _
    %s27 = sadd.s32 0, 0
    %s28 = smul.u32 64, %s27
    %p29 = scmp.lt.s32.totalorder %s28, 63
    %s30 = scalar_select %p29, %s28, 63
    %s31 = smul.addr %s30, 4
    %s32 = scalar_lea.vmem %s0, %s31
    %s33 = sadd.s32 0, 0
    %s34 = smul.u32 64, %s33
    %p35 = scmp.lt.s32.totalorder %s34, 63
    %s36 = scalar_select %p35, %s34, 63
    %s37 = smul.addr %s36, 4
    %s38 = scalar_lea.vmem %s0, %s37
    %s39 = sadd.s32 0, 0
    %s40 = smul.u32 64, %s39
    %s41 = sadd.s32 0, 0
    %s42 = smul.u32 64, %s41
    %v44 = vld [vmem:[%s38] sm:$0xf]
    %v45 = vld [vmem:[%s38 + $0x4] sm:$0xf]
    %v46 = vld [vmem:[%s38 + $0x8] sm:$0xf]
    %v47 = vld [vmem:[%s38 + $0xc] sm:$0xf]
    %v48 = vld [vmem:[%s38 + $0x10] sm:$0xf]
    %v49 = vld [vmem:[%s38 + $0x14] sm:$0xf]
    %v50 = vld [vmem:[%s38 + $0x18] sm:$0xf]
    %v51 = vld [vmem:[%s38 + $0x1c] sm:$0xf]
    %v52 = vld [vmem:[%s38 + $0x20] sm:$0xf]
    %v53 = vld [vmem:[%s38 + $0x24] sm:$0xf]
    %v54 = vld [vmem:[%s38 + $0x28] sm:$0xf]
    %v55 = vld [vmem:[%s38 + $0x2c] sm:$0xf]
    %v56 = vld [vmem:[%s38 + $0x30] sm:$0xf]
    %v57 = vld [vmem:[%s38 + $0x34] sm:$0xf]
    %v58 = vld [vmem:[%s38 + $0x38] sm:$0xf]
    %v59 = vld [vmem:[%s38 + $0x3c] sm:$0xf]
    %v60 = vld [vmem:[%s38 + $0x40] sm:$0xf]
    %v61 = vld [vmem:[%s38 + $0x44] sm:$0xf]
    %v62 = vld [vmem:[%s38 + $0x48] sm:$0xf]
    %v63 = vld [vmem:[%s38 + $0x4c] sm:$0xf]
    %v64 = vld [vmem:[%s38 + $0x50] sm:$0xf]
    %v65 = vld [vmem:[%s38 + $0x54] sm:$0xf]
    %v66 = vld [vmem:[%s38 + $0x58] sm:$0xf]
    %v67 = vld [vmem:[%s38 + $0x5c] sm:$0xf]
    %v68 = vld [vmem:[%s38 + $0x60] sm:$0xf]
    %v69 = vld [vmem:[%s38 + $0x64] sm:$0xf]
    %v70 = vld [vmem:[%s38 + $0x68] sm:$0xf]
    %v71 = vld [vmem:[%s38 + $0x6c] sm:$0xf]
    %v72 = vld [vmem:[%s38 + $0x70] sm:$0xf]
    %v73 = vld [vmem:[%s38 + $0x74] sm:$0xf]
    %v74 = vld [vmem:[%s38 + $0x78] sm:$0xf]
    %v75 = vld [vmem:[%s38 + $0x7c] sm:$0xf]
    %v76 = vld [vmem:[%s38 + $0x80] sm:$0xf]
    %v77 = vld [vmem:[%s38 + $0x84] sm:$0xf]
    %v78 = vld [vmem:[%s38 + $0x88] sm:$0xf]
    %v79 = vld [vmem:[%s38 + $0x8c] sm:$0xf]
    %v80 = vld [vmem:[%s38 + $0x90] sm:$0xf]
    %v81 = vld [vmem:[%s38 + $0x94] sm:$0xf]
    %v82 = vld [vmem:[%s38 + $0x98] sm:$0xf]
    %v83 = vld [vmem:[%s38 + $0x9c] sm:$0xf]
    %v84 = vld [vmem:[%s38 + $0xa0] sm:$0xf]
    %v85 = vld [vmem:[%s38 + $0xa4] sm:$0xf]
    %v86 = vld [vmem:[%s38 + $0xa8] sm:$0xf]
    %v87 = vld [vmem:[%s38 + $0xac] sm:$0xf]
    %v88 = vld [vmem:[%s38 + $0xb0] sm:$0xf]
    %v89 = vld [vmem:[%s38 + $0xb4] sm:$0xf]
    %v90 = vld [vmem:[%s38 + $0xb8] sm:$0xf]
    %v91 = vld [vmem:[%s38 + $0xbc] sm:$0xf]
    %v92 = vld [vmem:[%s38 + $0xc0] sm:$0xf]
    %v93 = vld [vmem:[%s38 + $0xc4] sm:$0xf]
    %v94 = vld [vmem:[%s38 + $0xc8] sm:$0xf]
    %v95 = vld [vmem:[%s38 + $0xcc] sm:$0xf]
    %v96 = vld [vmem:[%s38 + $0xd0] sm:$0xf]
    %v97 = vld [vmem:[%s38 + $0xd4] sm:$0xf]
    %v98 = vld [vmem:[%s38 + $0xd8] sm:$0xf]
    %v99 = vld [vmem:[%s38 + $0xdc] sm:$0xf]
    %v100 = vld [vmem:[%s38 + $0xe0] sm:$0xf]
    %v101 = vld [vmem:[%s38 + $0xe4] sm:$0xf]
    %v102 = vld [vmem:[%s38 + $0xe8] sm:$0xf]
    %v103 = vld [vmem:[%s38 + $0xec] sm:$0xf]
    %v104 = vld [vmem:[%s38 + $0xf0] sm:$0xf]
    %v105 = vld [vmem:[%s38 + $0xf4] sm:$0xf]
    %v106 = vld [vmem:[%s38 + $0xf8] sm:$0xf]
    %v107 = vld [vmem:[%s38 + $0xfc] sm:$0xf]
    %v108 = vld [vmem:[%s1] sm:$0xf]
    %v109 = vld [vmem:[%s1 + $0x4] sm:$0xf]
    %v110 = vld [vmem:[%s1 + $0x8] sm:$0xf]
    %v111 = vld [vmem:[%s1 + $0xc] sm:$0xf]
    %v112 = vld [vmem:[%s1 + $0x10] sm:$0x3]
    %v177 = vunpack.c.l.b16 %v44
    %v178 = vunpack.c.l.b16 %v45
    %v179 = vunpack.c.l.b16 %v46
    %v180 = vunpack.c.l.b16 %v47
    %v181 = vunpack.c.l.b16 %v48
    %v182 = vunpack.c.l.b16 %v49
    %v183 = vunpack.c.l.b16 %v50
    %v184 = vunpack.c.l.b16 %v51
    %v185 = vunpack.c.l.b16 %v52
    %v186 = vunpack.c.l.b16 %v53
    %v187 = vunpack.c.l.b16 %v54
    %v188 = vunpack.c.l.b16 %v55
    %v189 = vunpack.c.l.b16 %v56
    %v190 = vunpack.c.l.b16 %v57
    %v191 = vunpack.c.l.b16 %v58
    %v192 = vunpack.c.l.b16 %v59
    %v193 = vunpack.c.l.b16 %v60
    %v194 = vunpack.c.l.b16 %v61
    %v195 = vunpack.c.l.b16 %v62
    %v196 = vunpack.c.l.b16 %v63
    %v197 = vunpack.c.l.b16 %v64
    %v198 = vunpack.c.l.b16 %v65
    %v199 = vunpack.c.l.b16 %v66
    %v200 = vunpack.c.l.b16 %v67
    %v201 = vunpack.c.l.b16 %v68
    %v202 = vunpack.c.l.b16 %v69
    %v203 = vunpack.c.l.b16 %v70
    %v204 = vunpack.c.l.b16 %v71
    %v205 = vunpack.c.l.b16 %v72
    %v206 = vunpack.c.l.b16 %v73
    %v207 = vunpack.c.l.b16 %v74
    %v208 = vunpack.c.l.b16 %v75
    %v209 = vunpack.c.l.b16 %v76
    %v210 = vunpack.c.l.b16 %v77
    %v211 = vunpack.c.l.b16 %v78
    %v212 = vunpack.c.l.b16 %v79
    %v213 = vunpack.c.l.b16 %v80
    %v214 = vunpack.c.l.b16 %v81
    %v215 = vunpack.c.l.b16 %v82
    %v216 = vunpack.c.l.b16 %v83
    %v217 = vunpack.c.l.b16 %v84
    %v218 = vunpack.c.l.b16 %v85
    %v219 = vunpack.c.l.b16 %v86
    %v220 = vunpack.c.l.b16 %v87
    %v221 = vunpack.c.l.b16 %v88
    %v222 = vunpack.c.l.b16 %v89
    %v223 = vunpack.c.l.b16 %v90
    %v224 = vunpack.c.l.b16 %v91
    %v225 = vunpack.c.l.b16 %v92
    %v226 = vunpack.c.l.b16 %v93
    %v227 = vunpack.c.l.b16 %v94
    %v228 = vunpack.c.l.b16 %v95
    %v229 = vunpack.c.l.b16 %v96
    %v230 = vunpack.c.l.b16 %v97
    %v231 = vunpack.c.l.b16 %v98
    %v232 = vunpack.c.l.b16 %v99
    %v233 = vunpack.c.l.b16 %v100
    %v234 = vunpack.c.l.b16 %v101
    %v235 = vunpack.c.l.b16 %v102
    %v236 = vunpack.c.l.b16 %v103
    %v237 = vunpack.c.l.b16 %v104
    %v238 = vunpack.c.l.b16 %v105
    %v239 = vunpack.c.l.b16 %v106
    %v240 = vunpack.c.l.b16 %v107
    %v241 = vpack.c.b16 %v178, %v177
    %v242 = vpack.c.b16 %v180, %v179
    %v243 = vpack.c.b16 %v182, %v181
    %v244 = vpack.c.b16 %v184, %v183
    %v245 = vpack.c.b16 %v186, %v185
    %v246 = vpack.c.b16 %v188, %v187
    %v247 = vpack.c.b16 %v190, %v189
    %v248 = vpack.c.b16 %v192, %v191
    %v249 = vpack.c.b16 %v194, %v193
    %v250 = vpack.c.b16 %v196, %v195
    %v251 = vpack.c.b16 %v198, %v197
    %v252 = vpack.c.b16 %v200, %v199
    %v253 = vpack.c.b16 %v202, %v201
    %v254 = vpack.c.b16 %v204, %v203
    %v255 = vpack.c.b16 %v206, %v205
    %v256 = vpack.c.b16 %v208, %v207
    %v257 = vpack.c.b16 %v210, %v209
    %v258 = vpack.c.b16 %v212, %v211
    %v259 = vpack.c.b16 %v214, %v213
    %v260 = vpack.c.b16 %v216, %v215
    %v261 = vpack.c.b16 %v218, %v217
    %v262 = vpack.c.b16 %v220, %v219
    %v263 = vpack.c.b16 %v222, %v221
    %v264 = vpack.c.b16 %v224, %v223
    %v265 = vpack.c.b16 %v226, %v225
    %v266 = vpack.c.b16 %v228, %v227
    %v267 = vpack.c.b16 %v230, %v229
    %v268 = vpack.c.b16 %v232, %v231
    %v269 = vpack.c.b16 %v234, %v233
    %v270 = vpack.c.b16 %v236, %v235
    %v271 = vpack.c.b16 %v238, %v237
    %v272 = vpack.c.b16 %v240, %v239
    %v278 = vunpack.c.l.b16 %v108
    %v279 = vunpack.c.l.b16 %v109
    %v280 = vunpack.c.l.b16 %v110
    %v281 = vunpack.c.l.b16 %v111
    %v282 = vunpack.c.l.b16 %v112
    %v283 = vpack.c.b16 %v279, %v278
    %v284 = vpack.c.b16 %v281, %v280
    %v285 = vpack.c.b16 %v282, %v282
    %vm288 = vcmask 293888
    %v290 = vsel %vm288, %v241, 0
    %v293 = vsel %vm288, %v242, 0
    %v296 = vsel %vm288, %v243, 0
    %v299 = vsel %vm288, %v244, 0
    %v302 = vsel %vm288, %v245, 0
    %v305 = vsel %vm288, %v246, 0
    %v308 = vsel %vm288, %v247, 0
    %v311 = vsel %vm288, %v248, 0
    %v314 = vsel %vm288, %v249, 0
    %v317 = vsel %vm288, %v250, 0
    %v320 = vsel %vm288, %v251, 0
    %v323 = vsel %vm288, %v252, 0
    %v326 = vsel %vm288, %v253, 0
    %v329 = vsel %vm288, %v254, 0
    %v332 = vsel %vm288, %v255, 0
    %v335 = vsel %vm288, %v256, 0
    %v338 = vsel %vm288, %v257, 0
    %v341 = vsel %vm288, %v258, 0
    %v344 = vsel %vm288, %v259, 0
    %v347 = vsel %vm288, %v260, 0
    %v350 = vsel %vm288, %v261, 0
    %v353 = vsel %vm288, %v262, 0
    %v356 = vsel %vm288, %v263, 0
    %v359 = vsel %vm288, %v264, 0
    %v362 = vsel %vm288, %v265, 0
    %v365 = vsel %vm288, %v266, 0
    %v368 = vsel %vm288, %v267, 0
    %v371 = vsel %vm288, %v268, 0
    %v374 = vsel %vm288, %v269, 0
    %v377 = vsel %vm288, %v270, 0
    %v380 = vsel %vm288, %v271, 0
    %v383 = vsel %vm288, %v272, 0
    %vm385 = vcmask 1041408
    %v387 = vsel %vm385, %v285, 0
    %389 = vmatprep.subr.bf16.mxu0 0
    %390 = vmatpush1.bf16.msra.mxu0 0
    %391 = vmatprep.subr.bf16.mxu0 0
    %392 = vmatpush1.bf16.msra.mxu0 0
    %393 = vmatprep.subr.bf16.mxu0 0
    %394 = vmatpush1.bf16.msra.mxu0 0
    %395 = vmatprep.subr.bf16.mxu0 0
    %396 = vmatpush1.bf16.msra.mxu0 0
    %397 = vmatprep.subr.bf16.mxu0 0
    %398 = vmatpush1.bf16.msra.mxu0 0
    %399 = vmatprep.subr.bf16.mxu0 0
    %400 = vmatpush1.bf16.msra.mxu0 %v387
    %401 = vmatprep.subr.bf16.mxu0 0
    %402 = vmatpush1.bf16.msra.mxu0 %v284
    %403 = vmatprep.subr.bf16.mxu0 0
    %404 = vmatpush1.bf16.msra.mxu0 %v283
    %405 = vmatprep.subr.bf16.mxu0 0
    %406 = vmatpush2.bf16.msra.mxu0 0
    %407 = vmatprep.subr.bf16.mxu0 0
    %408 = vmatpush2.bf16.msra.mxu0 0
    %409 = vmatprep.subr.bf16.mxu0 0
    %410 = vmatpush2.bf16.msra.mxu0 0
    %411 = vmatprep.subr.bf16.mxu0 0
    %412 = vmatpush2.bf16.msra.mxu0 0
    %413 = vmatprep.subr.bf16.mxu0 0
    %414 = vmatpush2.bf16.msra.mxu0 0
    %415 = vmatprep.subr.bf16.mxu0 0
    %416 = vmatpush2.bf16.msra.mxu0 0
    %417 = vmatprep.subr.bf16.mxu0 0
    %418 = vmatpush2.bf16.msra.mxu0 0
    %419 = vmatprep.subr.bf16.mxu0 0
    %420 = vmatpush2.bf16.msra.mxu0 0
    %421 = vmatprep.mubr.bf16.mxu0 0
    %422 = vmatmul.mubr.bf16.gmra.mxu0 %v290
    %v423 = vpop.f32.mrf.mxu0
    %v424 = vadd.f32 0.0, %v423
    %v425 = vpop.f32.mrf.mxu0
    %v426 = vpop.f32.mrf.mxu0
    %v427 = vadd.f32 0.0, %v426
    %v428 = vpop.f32.mrf.mxu0
    %429 = vmatprep.mubr.bf16.mxu0 0
    %430 = vmatmul.mubr.bf16.gmra.mxu0 %v293
    %v431 = vpop.f32.mrf.mxu0
    %v432 = vadd.f32 0.0, %v431
    %v433 = vpop.f32.mrf.mxu0
    %v434 = vpop.f32.mrf.mxu0
    %v435 = vadd.f32 0.0, %v434
    %v436 = vpop.f32.mrf.mxu0
    %437 = vmatprep.mubr.bf16.mxu0 0
    %438 = vmatmul.mubr.bf16.gmra.mxu0 %v296
    %v439 = vpop.f32.mrf.mxu0
    %v440 = vadd.f32 0.0, %v439
    %v441 = vpop.f32.mrf.mxu0
    %v442 = vpop.f32.mrf.mxu0
    %v443 = vadd.f32 0.0, %v442
    %v444 = vpop.f32.mrf.mxu0
    %445 = vmatprep.mubr.bf16.mxu0 0
    %446 = vmatmul.mubr.bf16.gmra.mxu0 %v299
    %v447 = vpop.f32.mrf.mxu0
    %v448 = vadd.f32 0.0, %v447
    %v449 = vpop.f32.mrf.mxu0
    %v450 = vpop.f32.mrf.mxu0
    %v451 = vadd.f32 0.0, %v450
    %v452 = vpop.f32.mrf.mxu0
    %453 = vmatprep.mubr.bf16.mxu0 0
    %454 = vmatmul.mubr.bf16.gmra.mxu0 %v302
    %v455 = vpop.f32.mrf.mxu0
    %v456 = vadd.f32 0.0, %v455
    %v457 = vpop.f32.mrf.mxu0
    %v458 = vpop.f32.mrf.mxu0
    %v459 = vadd.f32 0.0, %v458
    %v460 = vpop.f32.mrf.mxu0
    %461 = vmatprep.mubr.bf16.mxu0 0
    %462 = vmatmul.mubr.bf16.gmra.mxu0 %v305
    %v463 = vpop.f32.mrf.mxu0
    %v464 = vadd.f32 0.0, %v463
    %v465 = vpop.f32.mrf.mxu0
    %v466 = vpop.f32.mrf.mxu0
    %v467 = vadd.f32 0.0, %v466
    %v468 = vpop.f32.mrf.mxu0
    %469 = vmatprep.mubr.bf16.mxu0 0
    %470 = vmatmul.mubr.bf16.gmra.mxu0 %v308
    %v471 = vpop.f32.mrf.mxu0
    %v472 = vadd.f32 0.0, %v471
    %v473 = vpop.f32.mrf.mxu0
    %v474 = vpop.f32.mrf.mxu0
    %v475 = vadd.f32 0.0, %v474
    %v476 = vpop.f32.mrf.mxu0
    %477 = vmatprep.mubr.bf16.mxu0 0
    %478 = vmatmul.mubr.bf16.gmra.mxu0 %v311
    %v479 = vpop.f32.mrf.mxu0
    %v480 = vadd.f32 0.0, %v479
    %v481 = vpop.f32.mrf.mxu0
    %v482 = vpop.f32.mrf.mxu0
    %v483 = vadd.f32 0.0, %v482
    %v484 = vpop.f32.mrf.mxu0
    %485 = vmatprep.mubr.bf16.mxu0 0
    %486 = vmatmul.mubr.bf16.gmra.mxu0 %v314
    %v487 = vpop.f32.mrf.mxu0
    %v488 = vadd.f32 0.0, %v487
    %v489 = vpop.f32.mrf.mxu0
    %v490 = vpop.f32.mrf.mxu0
    %v491 = vadd.f32 0.0, %v490
    %v492 = vpop.f32.mrf.mxu0
    %493 = vmatprep.mubr.bf16.mxu0 0
    %494 = vmatmul.mubr.bf16.gmra.mxu0 %v317
    %v495 = vpop.f32.mrf.mxu0
    %v496 = vadd.f32 0.0, %v495
    %v497 = vpop.f32.mrf.mxu0
    %v498 = vpop.f32.mrf.mxu0
    %v499 = vadd.f32 0.0, %v498
    %v500 = vpop.f32.mrf.mxu0
    %501 = vmatprep.mubr.bf16.mxu0 0
    %502 = vmatmul.mubr.bf16.gmra.mxu0 %v320
    %v503 = vpop.f32.mrf.mxu0
    %v504 = vadd.f32 0.0, %v503
    %v505 = vpop.f32.mrf.mxu0
    %v506 = vpop.f32.mrf.mxu0
    %v507 = vadd.f32 0.0, %v506
    %v508 = vpop.f32.mrf.mxu0
    %509 = vmatprep.mubr.bf16.mxu0 0
    %510 = vmatmul.mubr.bf16.gmra.mxu0 %v323
    %v511 = vpop.f32.mrf.mxu0
    %v512 = vadd.f32 0.0, %v511
    %v513 = vpop.f32.mrf.mxu0
    %v514 = vpop.f32.mrf.mxu0
    %v515 = vadd.f32 0.0, %v514
    %v516 = vpop.f32.mrf.mxu0
    %517 = vmatprep.mubr.bf16.mxu0 0
    %518 = vmatmul.mubr.bf16.gmra.mxu0 %v326
    %v519 = vpop.f32.mrf.mxu0
    %v520 = vadd.f32 0.0, %v519
    %v521 = vpop.f32.mrf.mxu0
    %v522 = vpop.f32.mrf.mxu0
    %v523 = vadd.f32 0.0, %v522
    %v524 = vpop.f32.mrf.mxu0
    %525 = vmatprep.mubr.bf16.mxu0 0
    %526 = vmatmul.mubr.bf16.gmra.mxu0 %v329
    %v527 = vpop.f32.mrf.mxu0
    %v528 = vadd.f32 0.0, %v527
    %v529 = vpop.f32.mrf.mxu0
    %v530 = vpop.f32.mrf.mxu0
    %v531 = vadd.f32 0.0, %v530
    %v532 = vpop.f32.mrf.mxu0
    %533 = vmatprep.mubr.bf16.mxu0 0
    %534 = vmatmul.mubr.bf16.gmra.mxu0 %v332
    %v535 = vpop.f32.mrf.mxu0
    %v536 = vadd.f32 0.0, %v535
    %v537 = vpop.f32.mrf.mxu0
    %v538 = vpop.f32.mrf.mxu0
    %v539 = vadd.f32 0.0, %v538
    %v540 = vpop.f32.mrf.mxu0
    %541 = vmatprep.mubr.bf16.mxu0 0
    %542 = vmatmul.mubr.bf16.gmra.mxu0 %v335
    %v543 = vpop.f32.mrf.mxu0
    %v544 = vadd.f32 0.0, %v543
    %v545 = vpop.f32.mrf.mxu0
    %v546 = vpop.f32.mrf.mxu0
    %v547 = vadd.f32 0.0, %v546
    %v548 = vpop.f32.mrf.mxu0
    %549 = vmatprep.mubr.bf16.mxu0 0
    %550 = vmatmul.mubr.bf16.gmra.mxu0 %v338
    %v551 = vpop.f32.mrf.mxu0
    %v552 = vadd.f32 0.0, %v551
    %v553 = vpop.f32.mrf.mxu0
    %v554 = vpop.f32.mrf.mxu0
    %v555 = vadd.f32 0.0, %v554
    %v556 = vpop.f32.mrf.mxu0
    %557 = vmatprep.mubr.bf16.mxu0 0
    %558 = vmatmul.mubr.bf16.gmra.mxu0 %v341
    %v559 = vpop.f32.mrf.mxu0
    %v560 = vadd.f32 0.0, %v559
    %v561 = vpop.f32.mrf.mxu0
    %v562 = vpop.f32.mrf.mxu0
    %v563 = vadd.f32 0.0, %v562
    %v564 = vpop.f32.mrf.mxu0
    %565 = vmatprep.mubr.bf16.mxu0 0
    %566 = vmatmul.mubr.bf16.gmra.mxu0 %v344
    %v567 = vpop.f32.mrf.mxu0
    %v568 = vadd.f32 0.0, %v567
    %v569 = vpop.f32.mrf.mxu0
    %v570 = vpop.f32.mrf.mxu0
    %v571 = vadd.f32 0.0, %v570
    %v572 = vpop.f32.mrf.mxu0
    %573 = vmatprep.mubr.bf16.mxu0 0
    %574 = vmatmul.mubr.bf16.gmra.mxu0 %v347
    %v575 = vpop.f32.mrf.mxu0
    %v576 = vadd.f32 0.0, %v575
    %v577 = vpop.f32.mrf.mxu0
    %v578 = vpop.f32.mrf.mxu0
    %v579 = vadd.f32 0.0, %v578
    %v580 = vpop.f32.mrf.mxu0
    %581 = vmatprep.mubr.bf16.mxu0 0
    %582 = vmatmul.mubr.bf16.gmra.mxu0 %v350
    %v583 = vpop.f32.mrf.mxu0
    %v584 = vadd.f32 0.0, %v583
    %v585 = vpop.f32.mrf.mxu0
    %v586 = vpop.f32.mrf.mxu0
    %v587 = vadd.f32 0.0, %v586
    %v588 = vpop.f32.mrf.mxu0
    %589 = vmatprep.mubr.bf16.mxu0 0
    %590 = vmatmul.mubr.bf16.gmra.mxu0 %v353
    %v591 = vpop.f32.mrf.mxu0
    %v592 = vadd.f32 0.0, %v591
    %v593 = vpop.f32.mrf.mxu0
    %v594 = vpop.f32.mrf.mxu0
    %v595 = vadd.f32 0.0, %v594
    %v596 = vpop.f32.mrf.mxu0
    %597 = vmatprep.mubr.bf16.mxu0 0
    %598 = vmatmul.mubr.bf16.gmra.mxu0 %v356
    %v599 = vpop.f32.mrf.mxu0
    %v600 = vadd.f32 0.0, %v599
    %v601 = vpop.f32.mrf.mxu0
    %v602 = vpop.f32.mrf.mxu0
    %v603 = vadd.f32 0.0, %v602
    %v604 = vpop.f32.mrf.mxu0
    %605 = vmatprep.mubr.bf16.mxu0 0
    %606 = vmatmul.mubr.bf16.gmra.mxu0 %v359
    %v607 = vpop.f32.mrf.mxu0
    %v608 = vadd.f32 0.0, %v607
    %v609 = vpop.f32.mrf.mxu0
    %v610 = vpop.f32.mrf.mxu0
    %v611 = vadd.f32 0.0, %v610
    %v612 = vpop.f32.mrf.mxu0
    %613 = vmatprep.mubr.bf16.mxu0 0
    %614 = vmatmul.mubr.bf16.gmra.mxu0 %v362
    %v615 = vpop.f32.mrf.mxu0
    %v616 = vadd.f32 0.0, %v615
    %v617 = vpop.f32.mrf.mxu0
    %v618 = vpop.f32.mrf.mxu0
    %v619 = vadd.f32 0.0, %v618
    %v620 = vpop.f32.mrf.mxu0
    %621 = vmatprep.mubr.bf16.mxu0 0
    %622 = vmatmul.mubr.bf16.gmra.mxu0 %v365
    %v623 = vpop.f32.mrf.mxu0
    %v624 = vadd.f32 0.0, %v623
    %v625 = vpop.f32.mrf.mxu0
    %v626 = vpop.f32.mrf.mxu0
    %v627 = vadd.f32 0.0, %v626
    %v628 = vpop.f32.mrf.mxu0
    %629 = vmatprep.mubr.bf16.mxu0 0
    %630 = vmatmul.mubr.bf16.gmra.mxu0 %v368
    %v631 = vpop.f32.mrf.mxu0
    %v632 = vadd.f32 0.0, %v631
    %v633 = vpop.f32.mrf.mxu0
    %v634 = vpop.f32.mrf.mxu0
    %v635 = vadd.f32 0.0, %v634
    %v636 = vpop.f32.mrf.mxu0
    %637 = vmatprep.mubr.bf16.mxu0 0
    %638 = vmatmul.mubr.bf16.gmra.mxu0 %v371
    %v639 = vpop.f32.mrf.mxu0
    %v640 = vadd.f32 0.0, %v639
    %v641 = vpop.f32.mrf.mxu0
    %v642 = vpop.f32.mrf.mxu0
    %v643 = vadd.f32 0.0, %v642
    %v644 = vpop.f32.mrf.mxu0
    %645 = vmatprep.mubr.bf16.mxu0 0
    %646 = vmatmul.mubr.bf16.gmra.mxu0 %v374
    %v647 = vpop.f32.mrf.mxu0
    %v648 = vadd.f32 0.0, %v647
    %v649 = vpop.f32.mrf.mxu0
    %v650 = vpop.f32.mrf.mxu0
    %v651 = vadd.f32 0.0, %v650
    %v652 = vpop.f32.mrf.mxu0
    %653 = vmatprep.mubr.bf16.mxu0 0
    %654 = vmatmul.mubr.bf16.gmra.mxu0 %v377
    %v655 = vpop.f32.mrf.mxu0
    %v656 = vadd.f32 0.0, %v655
    %v657 = vpop.f32.mrf.mxu0
    %v658 = vpop.f32.mrf.mxu0
    %v659 = vadd.f32 0.0, %v658
    %v660 = vpop.f32.mrf.mxu0
    %661 = vmatprep.mubr.bf16.mxu0 0
    %662 = vmatmul.mubr.bf16.gmra.mxu0 %v380
    %v663 = vpop.f32.mrf.mxu0
    %v664 = vadd.f32 0.0, %v663
    %v665 = vpop.f32.mrf.mxu0
    %v666 = vpop.f32.mrf.mxu0
    %v667 = vadd.f32 0.0, %v666
    %v668 = vpop.f32.mrf.mxu0
    %669 = vmatprep.mubr.bf16.mxu0 0
    %670 = vmatmul.mubr.bf16.gmra.mxu0 %v383
    %v671 = vpop.f32.mrf.mxu0
    %v672 = vadd.f32 0.0, %v671
    %v673 = vpop.f32.mrf.mxu0
    %v674 = vpop.f32.mrf.mxu0
    %v675 = vadd.f32 0.0, %v674
    %v676 = vpop.f32.mrf.mxu0
    %677 = vdwg.mxu0
    %v678 = vld [vmem:[%s2] sm:$0x1]
    %v680 = vlaneseq
    %v681 = vshrl.u32 %v680, 7
    %v682 = vsub.s32 0, %v681
    %v683 = vrot.slane %v678, %v682
    %v685 = vadd.f32 %v424, %v683
    %v686 = vadd.f32 %v427, %v683
    %v687 = vadd.f32 %v432, %v683
    %v688 = vadd.f32 %v435, %v683
    %v689 = vadd.f32 %v440, %v683
    %v690 = vadd.f32 %v443, %v683
    %v691 = vadd.f32 %v448, %v683
    %v692 = vadd.f32 %v451, %v683
    %v693 = vadd.f32 %v456, %v683
    %v694 = vadd.f32 %v459, %v683
    %v695 = vadd.f32 %v464, %v683
    %v696 = vadd.f32 %v467, %v683
    %v697 = vadd.f32 %v472, %v683
    %v698 = vadd.f32 %v475, %v683
    %v699 = vadd.f32 %v480, %v683
    %v700 = vadd.f32 %v483, %v683
    %v701 = vadd.f32 %v488, %v683
    %v702 = vadd.f32 %v491, %v683
    %v703 = vadd.f32 %v496, %v683
    %v704 = vadd.f32 %v499, %v683
    %v705 = vadd.f32 %v504, %v683
    %v706 = vadd.f32 %v507, %v683
    %v707 = vadd.f32 %v512, %v683
    %v708 = vadd.f32 %v515, %v683
    %v709 = vadd.f32 %v520, %v683
    %v710 = vadd.f32 %v523, %v683
    %v711 = vadd.f32 %v528, %v683
    %v712 = vadd.f32 %v531, %v683
    %v713 = vadd.f32 %v536, %v683
    %v714 = vadd.f32 %v539, %v683
    %v715 = vadd.f32 %v544, %v683
    %v716 = vadd.f32 %v547, %v683
    %v717 = vadd.f32 %v552, %v683
    %v718 = vadd.f32 %v555, %v683
    %v719 = vadd.f32 %v560, %v683
    %v720 = vadd.f32 %v563, %v683
    %v721 = vadd.f32 %v568, %v683
    %v722 = vadd.f32 %v571, %v683
    %v723 = vadd.f32 %v576, %v683
    %v724 = vadd.f32 %v579, %v683
    %v725 = vadd.f32 %v584, %v683
    %v726 = vadd.f32 %v587, %v683
    %v727 = vadd.f32 %v592, %v683
    %v728 = vadd.f32 %v595, %v683
    %v729 = vadd.f32 %v600, %v683
    %v730 = vadd.f32 %v603, %v683
    %v731 = vadd.f32 %v608, %v683
    %v732 = vadd.f32 %v611, %v683
    %v733 = vadd.f32 %v616, %v683
    %v734 = vadd.f32 %v619, %v683
    %v735 = vadd.f32 %v624, %v683
    %v736 = vadd.f32 %v627, %v683
    %v737 = vadd.f32 %v632, %v683
    %v738 = vadd.f32 %v635, %v683
    %v739 = vadd.f32 %v640, %v683
    %v740 = vadd.f32 %v643, %v683
    %v741 = vadd.f32 %v648, %v683
    %v742 = vadd.f32 %v651, %v683
    %v743 = vadd.f32 %v656, %v683
    %v744 = vadd.f32 %v659, %v683
    %v745 = vadd.f32 %v664, %v683
    %v746 = vadd.f32 %v667, %v683
    %v747 = vadd.f32 %v672, %v683
    %v748 = vadd.f32 %v675, %v683
    %v749 = vpack.c.bf16 %v686, %v685
    %v750 = vpack.c.bf16 %v688, %v687
    %v751 = vpack.c.bf16 %v690, %v689
    %v752 = vpack.c.bf16 %v692, %v691
    %v753 = vpack.c.bf16 %v694, %v693
    %v754 = vpack.c.bf16 %v696, %v695
    %v755 = vpack.c.bf16 %v698, %v697
    %v756 = vpack.c.bf16 %v700, %v699
    %v757 = vpack.c.bf16 %v702, %v701
    %v758 = vpack.c.bf16 %v704, %v703
    %v759 = vpack.c.bf16 %v706, %v705
    %v760 = vpack.c.bf16 %v708, %v707
    %v761 = vpack.c.bf16 %v710, %v709
    %v762 = vpack.c.bf16 %v712, %v711
    %v763 = vpack.c.bf16 %v714, %v713
    %v764 = vpack.c.bf16 %v716, %v715
    %v765 = vpack.c.bf16 %v718, %v717
    %v766 = vpack.c.bf16 %v720, %v719
    %v767 = vpack.c.bf16 %v722, %v721
    %v768 = vpack.c.bf16 %v724, %v723
    %v769 = vpack.c.bf16 %v726, %v725
    %v770 = vpack.c.bf16 %v728, %v727
    %v771 = vpack.c.bf16 %v730, %v729
    %v772 = vpack.c.bf16 %v732, %v731
    %v773 = vpack.c.bf16 %v734, %v733
    %v774 = vpack.c.bf16 %v736, %v735
    %v775 = vpack.c.bf16 %v738, %v737
    %v776 = vpack.c.bf16 %v740, %v739
    %v777 = vpack.c.bf16 %v742, %v741
    %v778 = vpack.c.bf16 %v744, %v743
    %v779 = vpack.c.bf16 %v746, %v745
    %v780 = vpack.c.bf16 %v748, %v747
    %v813 = vunpack.c.l.b16 %v749
    %v814 = vunpack.c.h.b16 %v749
    %v815 = vunpack.c.l.b16 %v750
    %v816 = vunpack.c.h.b16 %v750
    %v817 = vunpack.c.l.b16 %v751
    %v818 = vunpack.c.h.b16 %v751
    %v819 = vunpack.c.l.b16 %v752
    %v820 = vunpack.c.h.b16 %v752
    %v821 = vunpack.c.l.b16 %v753
    %v822 = vunpack.c.h.b16 %v753
    %v823 = vunpack.c.l.b16 %v754
    %v824 = vunpack.c.h.b16 %v754
    %v825 = vunpack.c.l.b16 %v755
    %v826 = vunpack.c.h.b16 %v755
    %v827 = vunpack.c.l.b16 %v756
    %v828 = vunpack.c.h.b16 %v756
    %v829 = vunpack.c.l.b16 %v757
    %v830 = vunpack.c.h.b16 %v757
    %v831 = vunpack.c.l.b16 %v758
    %v832 = vunpack.c.h.b16 %v758
    %v833 = vunpack.c.l.b16 %v759
    %v834 = vunpack.c.h.b16 %v759
    %v835 = vunpack.c.l.b16 %v760
    %v836 = vunpack.c.h.b16 %v760
    %v837 = vunpack.c.l.b16 %v761
    %v838 = vunpack.c.h.b16 %v761
    %v839 = vunpack.c.l.b16 %v762
    %v840 = vunpack.c.h.b16 %v762
    %v841 = vunpack.c.l.b16 %v763
    %v842 = vunpack.c.h.b16 %v763
    %v843 = vunpack.c.l.b16 %v764
    %v844 = vunpack.c.h.b16 %v764
    %v845 = vunpack.c.l.b16 %v765
    %v846 = vunpack.c.h.b16 %v765
    %v847 = vunpack.c.l.b16 %v766
    %v848 = vunpack.c.h.b16 %v766
    %v849 = vunpack.c.l.b16 %v767
    %v850 = vunpack.c.h.b16 %v767
    %v851 = vunpack.c.l.b16 %v768
    %v852 = vunpack.c.h.b16 %v768
    %v853 = vunpack.c.l.b16 %v769
    %v854 = vunpack.c.h.b16 %v769
    %v855 = vunpack.c.l.b16 %v770
    %v856 = vunpack.c.h.b16 %v770
    %v857 = vunpack.c.l.b16 %v771
    %v858 = vunpack.c.h.b16 %v771
    %v859 = vunpack.c.l.b16 %v772
    %v860 = vunpack.c.h.b16 %v772
    %v861 = vunpack.c.l.b16 %v773
    %v862 = vunpack.c.h.b16 %v773
    %v863 = vunpack.c.l.b16 %v774
    %v864 = vunpack.c.h.b16 %v774
    %v865 = vunpack.c.l.b16 %v775
    %v866 = vunpack.c.h.b16 %v775
    %v867 = vunpack.c.l.b16 %v776
    %v868 = vunpack.c.h.b16 %v776
    %v869 = vunpack.c.l.b16 %v777
    %v870 = vunpack.c.h.b16 %v777
    %v871 = vunpack.c.l.b16 %v778
    %v872 = vunpack.c.h.b16 %v778
    %v873 = vunpack.c.l.b16 %v779
    %v874 = vunpack.c.h.b16 %v779
    %v875 = vunpack.c.l.b16 %v780
    %v876 = vunpack.c.h.b16 %v780
    %v877 = vpack.c.b16 %v813, %v813
    %v878 = vpack.c.b16 %v814, %v814
    %v879 = vpack.c.b16 %v815, %v815
    %v880 = vpack.c.b16 %v816, %v816
    %v881 = vpack.c.b16 %v817, %v817
    %v882 = vpack.c.b16 %v818, %v818
    %v883 = vpack.c.b16 %v819, %v819
    %v884 = vpack.c.b16 %v820, %v820
    %v885 = vpack.c.b16 %v821, %v821
    %v886 = vpack.c.b16 %v822, %v822
    %v887 = vpack.c.b16 %v823, %v823
    %v888 = vpack.c.b16 %v824, %v824
    %v889 = vpack.c.b16 %v825, %v825
    %v890 = vpack.c.b16 %v826, %v826
    %v891 = vpack.c.b16 %v827, %v827
    %v892 = vpack.c.b16 %v828, %v828
    %v893 = vpack.c.b16 %v829, %v829
    %v894 = vpack.c.b16 %v830, %v830
    %v895 = vpack.c.b16 %v831, %v831
    %v896 = vpack.c.b16 %v832, %v832
    %v897 = vpack.c.b16 %v833, %v833
    %v898 = vpack.c.b16 %v834, %v834
    %v899 = vpack.c.b16 %v835, %v835
    %v900 = vpack.c.b16 %v836, %v836
    %v901 = vpack.c.b16 %v837, %v837
    %v902 = vpack.c.b16 %v838, %v838
    %v903 = vpack.c.b16 %v839, %v839
    %v904 = vpack.c.b16 %v840, %v840
    %v905 = vpack.c.b16 %v841, %v841
    %v906 = vpack.c.b16 %v842, %v842
    %v907 = vpack.c.b16 %v843, %v843
    %v908 = vpack.c.b16 %v844, %v844
    %v909 = vpack.c.b16 %v845, %v845
    %v910 = vpack.c.b16 %v846, %v846
    %v911 = vpack.c.b16 %v847, %v847
    %v912 = vpack.c.b16 %v848, %v848
    %v913 = vpack.c.b16 %v849, %v849
    %v914 = vpack.c.b16 %v850, %v850
    %v915 = vpack.c.b16 %v851, %v851
    %v916 = vpack.c.b16 %v852, %v852
    %v917 = vpack.c.b16 %v853, %v853
    %v918 = vpack.c.b16 %v854, %v854
    %v919 = vpack.c.b16 %v855, %v855
    %v920 = vpack.c.b16 %v856, %v856
    %v921 = vpack.c.b16 %v857, %v857
    %v922 = vpack.c.b16 %v858, %v858
    %v923 = vpack.c.b16 %v859, %v859
    %v924 = vpack.c.b16 %v860, %v860
    %v925 = vpack.c.b16 %v861, %v861
    %v926 = vpack.c.b16 %v862, %v862
    %v927 = vpack.c.b16 %v863, %v863
    %v928 = vpack.c.b16 %v864, %v864
    %v929 = vpack.c.b16 %v865, %v865
    %v930 = vpack.c.b16 %v866, %v866
    %v931 = vpack.c.b16 %v867, %v867
    %v932 = vpack.c.b16 %v868, %v868
    %v933 = vpack.c.b16 %v869, %v869
    %v934 = vpack.c.b16 %v870, %v870
    %v935 = vpack.c.b16 %v871, %v871
    %v936 = vpack.c.b16 %v872, %v872
    %v937 = vpack.c.b16 %v873, %v873
    %v938 = vpack.c.b16 %v874, %v874
    %v939 = vpack.c.b16 %v875, %v875
    %v940 = vpack.c.b16 %v876, %v876
    %1005 = vst [vmem:[#allocation2] sm:$0xf] %v877
    %1006 = vst [vmem:[#allocation2 + $0x4] sm:$0xf] %v878
    %1007 = vst [vmem:[#allocation2 + $0x8] sm:$0xf] %v879
    %1008 = vst [vmem:[#allocation2 + $0xc] sm:$0xf] %v880
    %1009 = vst [vmem:[#allocation2 + $0x10] sm:$0xf] %v881
    %1010 = vst [vmem:[#allocation2 + $0x14] sm:$0xf] %v882
    %1011 = vst [vmem:[#allocation2 + $0x18] sm:$0xf] %v883
    %1012 = vst [vmem:[#allocation2 + $0x1c] sm:$0xf] %v884
    %1013 = vst [vmem:[#allocation2 + $0x20] sm:$0xf] %v885
    %1014 = vst [vmem:[#allocation2 + $0x24] sm:$0xf] %v886
    %1015 = vst [vmem:[#allocation2 + $0x28] sm:$0xf] %v887
    %1016 = vst [vmem:[#allocation2 + $0x2c] sm:$0xf] %v888
    %1017 = vst [vmem:[#allocation2 + $0x30] sm:$0xf] %v889
    %1018 = vst [vmem:[#allocation2 + $0x34] sm:$0xf] %v890
    %1019 = vst [vmem:[#allocation2 + $0x38] sm:$0xf] %v891
    %1020 = vst [vmem:[#allocation2 + $0x3c] sm:$0xf] %v892
    %1021 = vst [vmem:[#allocation2 + $0x40] sm:$0xf] %v893
    %1022 = vst [vmem:[#allocation2 + $0x44] sm:$0xf] %v894
    %1023 = vst [vmem:[#allocation2 + $0x48] sm:$0xf] %v895
    %1024 = vst [vmem:[#allocation2 + $0x4c] sm:$0xf] %v896
    %1025 = vst [vmem:[#allocation2 + $0x50] sm:$0xf] %v897
    %1026 = vst [vmem:[#allocation2 + $0x54] sm:$0xf] %v898
    %1027 = vst [vmem:[#allocation2 + $0x58] sm:$0xf] %v899
    %1028 = vst [vmem:[#allocation2 + $0x5c] sm:$0xf] %v900
    %1029 = vst [vmem:[#allocation2 + $0x60] sm:$0xf] %v901
    %1030 = vst [vmem:[#allocation2 + $0x64] sm:$0xf] %v902
    %1031 = vst [vmem:[#allocation2 + $0x68] sm:$0xf] %v903
    %1032 = vst [vmem:[#allocation2 + $0x6c] sm:$0xf] %v904
    %1033 = vst [vmem:[#allocation2 + $0x70] sm:$0xf] %v905
    %1034 = vst [vmem:[#allocation2 + $0x74] sm:$0xf] %v906
    %1035 = vst [vmem:[#allocation2 + $0x78] sm:$0xf] %v907
    %1036 = vst [vmem:[#allocation2 + $0x7c] sm:$0xf] %v908
    %1037 = vst [vmem:[#allocation2 + $0x80] sm:$0xf] %v909
    %1038 = vst [vmem:[#allocation2 + $0x84] sm:$0xf] %v910
    %1039 = vst [vmem:[#allocation2 + $0x88] sm:$0xf] %v911
    %1040 = vst [vmem:[#allocation2 + $0x8c] sm:$0xf] %v912
    %1041 = vst [vmem:[#allocation2 + $0x90] sm:$0xf] %v913
    %1042 = vst [vmem:[#allocation2 + $0x94] sm:$0xf] %v914
    %1043 = vst [vmem:[#allocation2 + $0x98] sm:$0xf] %v915
    %1044 = vst [vmem:[#allocation2 + $0x9c] sm:$0xf] %v916
    %1045 = vst [vmem:[#allocation2 + $0xa0] sm:$0xf] %v917
    %1046 = vst [vmem:[#allocation2 + $0xa4] sm:$0xf] %v918
    %1047 = vst [vmem:[#allocation2 + $0xa8] sm:$0xf] %v919
    %1048 = vst [vmem:[#allocation2 + $0xac] sm:$0xf] %v920
    %1049 = vst [vmem:[#allocation2 + $0xb0] sm:$0xf] %v921
    %1050 = vst [vmem:[#allocation2 + $0xb4] sm:$0xf] %v922
    %1051 = vst [vmem:[#allocation2 + $0xb8] sm:$0xf] %v923
    %1052 = vst [vmem:[#allocation2 + $0xbc] sm:$0xf] %v924
    %1053 = vst [vmem:[#allocation2 + $0xc0] sm:$0xf] %v925
    %1054 = vst [vmem:[#allocation2 + $0xc4] sm:$0xf] %v926
    %1055 = vst [vmem:[#allocation2 + $0xc8] sm:$0xf] %v927
    %1056 = vst [vmem:[#allocation2 + $0xcc] sm:$0xf] %v928
    %1057 = vst [vmem:[#allocation2 + $0xd0] sm:$0xf] %v929
    %1058 = vst [vmem:[#allocation2 + $0xd4] sm:$0xf] %v930
    %1059 = vst [vmem:[#allocation2 + $0xd8] sm:$0xf] %v931
    %1060 = vst [vmem:[#allocation2 + $0xdc] sm:$0xf] %v932
    %1061 = vst [vmem:[#allocation2 + $0xe0] sm:$0xf] %v933
    %1062 = vst [vmem:[#allocation2 + $0xe4] sm:$0xf] %v934
    %1063 = vst [vmem:[#allocation2 + $0xe8] sm:$0xf] %v935
    %1064 = vst [vmem:[#allocation2 + $0xec] sm:$0xf] %v936
    %1065 = vst [vmem:[#allocation2 + $0xf0] sm:$0xf] %v937
    %1066 = vst [vmem:[#allocation2 + $0xf4] sm:$0xf] %v938
    %1067 = vst [vmem:[#allocation2 + $0xf8] sm:$0xf] %v939
    %1068 = vst [vmem:[#allocation2 + $0xfc] sm:$0xf] %v940
    %p1069 = scmp.eq.s32.totalorder 0, 0
    // Predicated region
    $region14: #{tpu_custom_call.1} parent=1 // pred_check
      %p1070 = pneg %p1069
    $region15: #{tpu_custom_call.1} parent=1 // pred_check_branch
      %1072 = sbr.rel (%p1070) target = $region17
    $region16: #{tpu_custom_call.1} parent=1 // pred_region
      %1073 = vst [vmem:[#allocation4] sm:$0x1] 0.0
      %1074 = vst [vmem:[#allocation6] sm:$0x1] 0.0
    $region17: #{tpu_custom_call.1} parent=1 // pred_fallthru
      _
    %v1075 = vld [vmem:[#allocation4] sm:$0x1]
    %v1076 = vadd.f32 %v424, %v427
    %v1077 = vadd.f32 %v1076, %v432
    %v1078 = vadd.f32 %v1077, %v435
    %v1079 = vadd.f32 %v1078, %v440
    %v1080 = vadd.f32 %v1079, %v443
    %v1081 = vadd.f32 %v1080, %v448
    %v1082 = vadd.f32 %v1081, %v451
    %v1083 = vadd.f32 %v1082, %v456
    %v1084 = vadd.f32 %v1083, %v459
    %v1085 = vadd.f32 %v1084, %v464
    %v1086 = vadd.f32 %v1085, %v467
    %v1087 = vadd.f32 %v1086, %v472
    %v1088 = vadd.f32 %v1087, %v475
    %v1089 = vadd.f32 %v1088, %v480
    %v1090 = vadd.f32 %v1089, %v483
    %v1091 = vadd.f32 %v1090, %v488
    %v1092 = vadd.f32 %v1091, %v491
    %v1093 = vadd.f32 %v1092, %v496
    %v1094 = vadd.f32 %v1093, %v499
    %v1095 = vadd.f32 %v1094, %v504
    %v1096 = vadd.f32 %v1095, %v507
    %v1097 = vadd.f32 %v1096, %v512
    %v1098 = vadd.f32 %v1097, %v515
    %v1099 = vadd.f32 %v1098, %v520
    %v1100 = vadd.f32 %v1099, %v523
    %v1101 = vadd.f32 %v1100, %v528
    %v1102 = vadd.f32 %v1101, %v531
    %v1103 = vadd.f32 %v1102, %v536
    %v1104 = vadd.f32 %v1103, %v539
    %v1105 = vadd.f32 %v1104, %v544
    %v1106 = vadd.f32 %v1105, %v547
    %v1107 = vadd.f32 %v1106, %v552
    %v1108 = vadd.f32 %v1107, %v555
    %v1109 = vadd.f32 %v1108, %v560
    %v1110 = vadd.f32 %v1109, %v563
    %v1111 = vadd.f32 %v1110, %v568
    %v1112 = vadd.f32 %v1111, %v571
    %v1113 = vadd.f32 %v1112, %v576
    %v1114 = vadd.f32 %v1113, %v579
    %v1115 = vadd.f32 %v1114, %v584
    %v1116 = vadd.f32 %v1115, %v587
    %v1117 = vadd.f32 %v1116, %v592
    %v1118 = vadd.f32 %v1117, %v595
    %v1119 = vadd.f32 %v1118, %v600
    %v1120 = vadd.f32 %v1119, %v603
    %v1121 = vadd.f32 %v1120, %v608
    %v1122 = vadd.f32 %v1121, %v611
    %v1123 = vadd.f32 %v1122, %v616
    %v1124 = vadd.f32 %v1123, %v619
    %v1125 = vadd.f32 %v1124, %v624
    %v1126 = vadd.f32 %v1125, %v627
    %v1127 = vadd.f32 %v1126, %v632
    %v1128 = vadd.f32 %v1127, %v635
    %v1129 = vadd.f32 %v1128, %v640
    %v1130 = vadd.f32 %v1129, %v643
    %v1131 = vadd.f32 %v1130, %v648
    %v1132 = vadd.f32 %v1131, %v651
    %v1133 = vadd.f32 %v1132, %v656
    %v1134 = vadd.f32 %v1133, %v659
    %v1135 = vadd.f32 %v1134, %v664
    %v1136 = vadd.f32 %v1135, %v667
    %v1137 = vadd.f32 %v1136, %v672
    %v1138 = vadd.f32 %v1137, %v675
    %v1139 = vrot.slane %v1138, 4
    %v1140 = vadd.f32 %v1138, %v1139
    %v1141 = vrot.slane %v1140, 2
    %v1142 = vadd.f32 %v1140, %v1141
    %v1143 = vrot.slane %v1142, 1
    %v1144 = vadd.f32 %v1142, %v1143
    %v1145 = vadd.f32 %v1075, %v1144
    %1146 = vst [vmem:[#allocation4] sm:$0x1] %v1145
    %v1147 = vld [vmem:[#allocation6] sm:$0x1]
    %v1148 = vmul.f32 %v424, %v424
    %v1149 = vmul.f32 %v427, %v427
    %v1150 = vmul.f32 %v432, %v432
    %v1151 = vmul.f32 %v435, %v435
    %v1152 = vmul.f32 %v440, %v440
    %v1153 = vmul.f32 %v443, %v443
    %v1154 = vmul.f32 %v448, %v448
    %v1155 = vmul.f32 %v451, %v451
    %v1156 = vmul.f32 %v456, %v456
    %v1157 = vmul.f32 %v459, %v459
    %v1158 = vmul.f32 %v464, %v464
    %v1159 = vmul.f32 %v467, %v467
    %v1160 = vmul.f32 %v472, %v472
    %v1161 = vmul.f32 %v475, %v475
    %v1162 = vmul.f32 %v480, %v480
    %v1163 = vmul.f32 %v483, %v483
    %v1164 = vmul.f32 %v488, %v488
    %v1165 = vmul.f32 %v491, %v491
    %v1166 = vmul.f32 %v496, %v496
    %v1167 = vmul.f32 %v499, %v499
    %v1168 = vmul.f32 %v504, %v504
    %v1169 = vmul.f32 %v507, %v507
    %v1170 = vmul.f32 %v512, %v512
    %v1171 = vmul.f32 %v515, %v515
    %v1172 = vmul.f32 %v520, %v520
    %v1173 = vmul.f32 %v523, %v523
    %v1174 = vmul.f32 %v528, %v528
    %v1175 = vmul.f32 %v531, %v531
    %v1176 = vmul.f32 %v536, %v536
    %v1177 = vmul.f32 %v539, %v539
    %v1178 = vmul.f32 %v544, %v544
    %v1179 = vmul.f32 %v547, %v547
    %v1180 = vmul.f32 %v552, %v552
    %v1181 = vmul.f32 %v555, %v555
    %v1182 = vmul.f32 %v560, %v560
    %v1183 = vmul.f32 %v563, %v563
    %v1184 = vmul.f32 %v568, %v568
    %v1185 = vmul.f32 %v571, %v571
    %v1186 = vmul.f32 %v576, %v576
    %v1187 = vmul.f32 %v579, %v579
    %v1188 = vmul.f32 %v584, %v584
    %v1189 = vmul.f32 %v587, %v587
    %v1190 = vmul.f32 %v592, %v592
    %v1191 = vmul.f32 %v595, %v595
    %v1192 = vmul.f32 %v600, %v600
    %v1193 = vmul.f32 %v603, %v603
    %v1194 = vmul.f32 %v608, %v608
    %v1195 = vmul.f32 %v611, %v611
    %v1196 = vmul.f32 %v616, %v616
    %v1197 = vmul.f32 %v619, %v619
    %v1198 = vmul.f32 %v624, %v624
    %v1199 = vmul.f32 %v627, %v627
    %v1200 = vmul.f32 %v632, %v632
    %v1201 = vmul.f32 %v635, %v635
    %v1202 = vmul.f32 %v640, %v640
    %v1203 = vmul.f32 %v643, %v643
    %v1204 = vmul.f32 %v648, %v648
    %v1205 = vmul.f32 %v651, %v651
    %v1206 = vmul.f32 %v656, %v656
    %v1207 = vmul.f32 %v659, %v659
    %v1208 = vmul.f32 %v664, %v664
    %v1209 = vmul.f32 %v667, %v667
    %v1210 = vmul.f32 %v672, %v672
    %v1211 = vmul.f32 %v675, %v675
    %v1212 = vadd.f32 %v1148, %v1149
    %v1213 = vadd.f32 %v1212, %v1150
    %v1214 = vadd.f32 %v1213, %v1151
    %v1215 = vadd.f32 %v1214, %v1152
    %v1216 = vadd.f32 %v1215, %v1153
    %v1217 = vadd.f32 %v1216, %v1154
    %v1218 = vadd.f32 %v1217, %v1155
    %v1219 = vadd.f32 %v1218, %v1156
    %v1220 = vadd.f32 %v1219, %v1157
    %v1221 = vadd.f32 %v1220, %v1158
    %v1222 = vadd.f32 %v1221, %v1159
    %v1223 = vadd.f32 %v1222, %v1160
    %v1224 = vadd.f32 %v1223, %v1161
    %v1225 = vadd.f32 %v1224, %v1162
    %v1226 = vadd.f32 %v1225, %v1163
    %v1227 = vadd.f32 %v1226, %v1164
    %v1228 = vadd.f32 %v1227, %v1165
    %v1229 = vadd.f32 %v1228, %v1166
    %v1230 = vadd.f32 %v1229, %v1167
    %v1231 = vadd.f32 %v1230, %v1168
    %v1232 = vadd.f32 %v1231, %v1169
    %v1233 = vadd.f32 %v1232, %v1170
    %v1234 = vadd.f32 %v1233, %v1171
    %v1235 = vadd.f32 %v1234, %v1172
    %v1236 = vadd.f32 %v1235, %v1173
    %v1237 = vadd.f32 %v1236, %v1174
    %v1238 = vadd.f32 %v1237, %v1175
    %v1239 = vadd.f32 %v1238, %v1176
    %v1240 = vadd.f32 %v1239, %v1177
    %v1241 = vadd.f32 %v1240, %v1178
    %v1242 = vadd.f32 %v1241, %v1179
    %v1243 = vadd.f32 %v1242, %v1180
    %v1244 = vadd.f32 %v1243, %v1181
    %v1245 = vadd.f32 %v1244, %v1182
    %v1246 = vadd.f32 %v1245, %v1183
    %v1247 = vadd.f32 %v1246, %v1184
    %v1248 = vadd.f32 %v1247, %v1185
    %v1249 = vadd.f32 %v1248, %v1186
    %v1250 = vadd.f32 %v1249, %v1187
    %v1251 = vadd.f32 %v1250, %v1188
    %v1252 = vadd.f32 %v1251, %v1189
    %v1253 = vadd.f32 %v1252, %v1190
    %v1254 = vadd.f32 %v1253, %v1191
    %v1255 = vadd.f32 %v1254, %v1192
    %v1256 = vadd.f32 %v1255, %v1193
    %v1257 = vadd.f32 %v1256, %v1194
    %v1258 = vadd.f32 %v1257, %v1195
    %v1259 = vadd.f32 %v1258, %v1196
    %v1260 = vadd.f32 %v1259, %v1197
    %v1261 = vadd.f32 %v1260, %v1198
    %v1262 = vadd.f32 %v1261, %v1199
    %v1263 = vadd.f32 %v1262, %v1200
    %v1264 = vadd.f32 %v1263, %v1201
    %v1265 = vadd.f32 %v1264, %v1202
    %v1266 = vadd.f32 %v1265, %v1203
    %v1267 = vadd.f32 %v1266, %v1204
    %v1268 = vadd.f32 %v1267, %v1205
    %v1269 = vadd.f32 %v1268, %v1206
    %v1270 = vadd.f32 %v1269, %v1207
    %v1271 = vadd.f32 %v1270, %v1208
    %v1272 = vadd.f32 %v1271, %v1209
    %v1273 = vadd.f32 %v1272, %v1210
    %v1274 = vadd.f32 %v1273, %v1211
    %v1275 = vrot.slane %v1274, 4
    %v1276 = vadd.f32 %v1274, %v1275
    %v1277 = vrot.slane %v1276, 2
    %v1278 = vadd.f32 %v1276, %v1277
    %v1279 = vrot.slane %v1278, 1
    %v1280 = vadd.f32 %v1278, %v1279
    %v1281 = vadd.f32 %v1147, %v1280
    %1282 = vst [vmem:[#allocation6] sm:$0x1] %v1281
    // Predicated region
    $region18: #{tpu_custom_call.1} parent=1 // pred_check
      _
    $region19: #{tpu_custom_call.1} parent=1 // pred_check_branch
      %1284 = sbr.rel (0) target = $region21
    $region20: #{tpu_custom_call.1} parent=1 // pred_region
      %s1285 = sadd.s32 0, 0
      %s1286 = smul.u32 64, %s1285
      %s1288 = ssub.s32 4096, 4096
      %1289 = vsyncadd [#allocation3], %s1288
      %s1290 = smul.addr %s1286, 64
      %s1291 = scalar_lea.hbm %s3, %s1290
      %s1292 = sshll.u32 [#allocation2], 4
      %s1293 = int_to_ptr.vmem [resolvable:$true] %s1292
      %1298 = dma.vmem_to_hbm [thread:$0]  %s1293, 4096, %s1291, [#allocation3], 64, 64, 4
    $region21: #{tpu_custom_call.1} parent=1 // pred_fallthru
      _
    // Predicated region
    $region22: #{tpu_custom_call.1} parent=1 // pred_check
      _
    $region23: #{tpu_custom_call.1} parent=1 // pred_check_branch
      %1300 = sbr.rel (0) target = $region25
    $region24: #{tpu_custom_call.1} parent=1 // pred_region
      %s1302 = ssub.s32 16, 16
      %1303 = vsyncadd [#allocation5], %s1302
      %s1305 = sshll.u32 [#allocation4], 4
      %s1306 = int_to_ptr.vmem [resolvable:$true] %s1305
      %1308 = dma.vmem_to_hbm [thread:$0]  %s1306, 16, %s4, [#allocation5]
    $region25: #{tpu_custom_call.1} parent=1 // pred_fallthru
      _
    // Predicated region
    $region26: #{tpu_custom_call.1} parent=1 // pred_check
      _
    $region27: #{tpu_custom_call.1} parent=1 // pred_check_branch
      %1310 = sbr.rel (0) target = $region29
    $region28: #{tpu_custom_call.1} parent=1 // pred_region
      %s1312 = ssub.s32 16, 16
      %1313 = vsyncadd [#allocation5], %s1312
      %s1315 = sshll.u32 [#allocation6], 4
      %s1316 = int_to_ptr.vmem [resolvable:$true] %s1315
      %1318 = dma.vmem_to_hbm [thread:$0]  %s1316, 16, %s5, [#allocation5]
    $region29: #{tpu_custom_call.1} parent=1 // pred_fallthru
      _
    // Predicated region
    $region30: #{tpu_custom_call.1} parent=1 // pred_check
      _
    $region31: #{tpu_custom_call.1} parent=1 // pred_check_branch
      %1320 = sbr.rel (0) target = $region33
    $region32: #{tpu_custom_call.1} parent=1 // pred_region
      %1321 = dma.done [#allocation3], 4096
    $region33: #{tpu_custom_call.1} parent=1 // pred_fallthru
      _
    // Predicated region
    $region34: #{tpu_custom_call.1} parent=1 // pred_check
      _
    $region35: #{tpu_custom_call.1} parent=1 // pred_check_branch
      %1323 = sbr.rel (0) target = $region37
    $region36: #{tpu_custom_call.1} parent=1 // pred_region
      %1324 = dma.done [#allocation5], 16
    $region37: #{tpu_custom_call.1} parent=1 // pred_fallthru
      _
    // Predicated region
    $region38: #{tpu_custom_call.1} parent=1 // pred_check
      _
    $region39: #{tpu_custom_call.1} parent=1 // pred_check_branch
      %1326 = sbr.rel (0) target = $region41
    $region40: #{tpu_custom_call.1} parent=1 // pred_region
      %1327 = dma.done [#allocation5], 16
    $region41: #{tpu_custom_call.1} parent=1 // pred_fallthru
      _
    %1328 = vsyncpa [#allocation3], 1
    %1329 = vsyncpa [#allocation5], 1

</llo_original>
